<compile_context>
chip_gen: v5e
topology: v5e:2x2
jax: 0.10.0
libtpu: 0.0.40
codegen_flags: <defaults>
</compile_context>

<pallas_src>
import functools

import jax
import jax.numpy as jnp
from jax.experimental import pallas as pl
from jax.experimental.pallas import tpu as pltpu

LEAKY_SLOPE = 0.01   # torch.nn.LeakyReLU default
LN_EPS = 1e-5        # torch.nn.LayerNorm default


def _round_up(n, m):
    return ((n + m - 1) // m) * m


def _leaky_relu(x):
    # max(x, a*x) == LeakyReLU(x) for 0 < a < 1 : 2 VPU ops, no compare+select.
    return jnp.maximum(x, LEAKY_SLOPE * x)


def q_kernel(xs_ref, xa_ref, w1s_ref, w1a_ref, w2_ref, vecs_ref, o_ref):
    """Batch-on-lanes: activations are (H, tb); features on sublanes, batch on lanes."""
    vecs = vecs_ref[...]                     # (H, 8) packed parameters
    b1 = vecs[:, 0:1]                        # (H, 1) Linear1 bias
    b2 = vecs[:, 1:2]                        # (H, 1) Linear2 bias (+ LN1 beta fold)
    c = vecs[:, 2:3]                         # (H, 1) gamma2 * w3
    sum_c = vecs[0:1, 3:4]                   # (1, 1) sum(gamma2 * w3)
    kconst = vecs[0:1, 4:5]                  # (1, 1) beta2 . w3 + b3

    inv_h = 1.0 / w2_ref.shape[0]            # 1/H (static)

    # Linear1 on un-concatenated inputs:  W1^T [s;a]^T = W1s^T s^T + W1a^T a^T
    h = (jnp.dot(w1s_ref[...], xs_ref[...], preferred_element_type=jnp.float32)
         + jnp.dot(w1a_ref[...], xa_ref[...], preferred_element_type=jnp.float32)
         + b1)
    h = _leaky_relu(h)

    # LayerNorm1: normalize only (its affine is folded into W2'/b2').
    # One-pass moments; activations are O(1) so E[x^2]-mu^2 is safe at f32.
    mu1 = jnp.sum(h, axis=0, keepdims=True) * inv_h            # (1, tb)
    ex2 = jnp.sum(h * h, axis=0, keepdims=True) * inv_h
    xn = (h - mu1) * jax.lax.rsqrt(ex2 - mu1 * mu1 + LN_EPS)

    # Linear2 (LN1 affine pre-folded) -> LeakyReLU.
    y = jnp.dot(w2_ref[...], xn, preferred_element_type=jnp.float32) + b2
    y = _leaky_relu(y)

    # LN2 + Linear3 fused:  q = rstd2*(sum(y*c) - mean(y)*sum(c)) + (be2.w3 + b3)
    mu2 = jnp.sum(y, axis=0, keepdims=True) * inv_h
    ey2 = jnp.sum(y * y, axis=0, keepdims=True) * inv_h
    rstd2 = jax.lax.rsqrt(ey2 - mu2 * mu2 + LN_EPS)
    s_yc = jnp.sum(y * c, axis=0, keepdims=True)
    q = rstd2 * (s_yc - mu2 * sum_c) + kconst                  # (1, tb) lane-dense
    o_ref[...] = q.astype(o_ref.dtype)


def _pick_batch_tile(B, block_b):
    """Lane tile: multiple of 128; force >= 2 grid steps when B > 128 so the
    ("parallel",) axis uses both v7x TensorCores; small enough for v5e VMEM."""
    if B <= 128:
        return B                                   # single (full-dim) tile
    tb = max(128, min((block_b // 128) * 128, _round_up(B, 128)))
    if pl.cdiv(B, tb) == 1:
        tb = _round_up(pl.cdiv(B, 2), 128)
    return tb


@functools.partial(jax.jit, static_argnames=("block_b",))
def q_forward(state, action, params, *, block_b=1024):
    """state: [B, S], action: [B, A]  ->  [B, 1] critic value."""
    B, S = state.shape
    A = action.shape[1]
    H = params["w2p_t"].shape[0]

    tb = _pick_batch_tile(B, block_b)
    grid = (pl.cdiv(B, tb),)

    col_tile = lambda i: (0, i)        # activations/output: march over batch lanes
    resident = lambda i: (0, 0)        # weights: constant index -> fetched once

    out = pl.pallas_call(
        q_kernel,
        out_shape=jax.ShapeDtypeStruct((1, B), jnp.float32),
        grid=grid,
        in_specs=[
            pl.BlockSpec((S, tb), col_tile),   # state^T tile (features on sublanes)
            pl.BlockSpec((A, tb), col_tile),   # action^T tile
            pl.BlockSpec((H, S), resident),    # W1[:S]^T
            pl.BlockSpec((H, A), resident),    # W1[S:]^T
            pl.BlockSpec((H, H), resident),    # W2'^T  (LN1 affine folded in)
            pl.BlockSpec((H, 8), resident),    # packed b1 | b2' | c | sum(c) | K
        ],
        out_specs=pl.BlockSpec((1, tb), col_tile),      # lane-dense output row
        compiler_params=pltpu.CompilerParams(
            dimension_semantics=("parallel",)),         # batch axis -> both v7x TCs
    )(state.T, action.T, params["w1s_t"], params["w1a_t"],
      params["w2p_t"], params["vecs"])
    return out.reshape(B, 1)


def init_raw_params(key, state_size, action_size, hidden_size):
    """Raw torch-layout parameters (nontrivial LN affines to exercise the folds)."""
    ks = jax.random.split(key, 10)
    in_dim = state_size + action_size

    def lin(kw, kb, fan_in, fan_out):
        bound = 1.0 / jnp.sqrt(jnp.float32(fan_in))
        w = jax.random.uniform(kw, (fan_in, fan_out), jnp.float32, -bound, bound)
        b = jax.random.uniform(kb, (fan_out,), jnp.float32, -bound, bound)
        return w, b

    w1, b1 = lin(ks[0], ks[1], in_dim, hidden_size)
    w2, b2 = lin(ks[2], ks[3], hidden_size, hidden_size)
    w3, b3 = lin(ks[4], ks[5], hidden_size, 1)
    g1 = 1.0 + 0.1 * jax.random.normal(ks[6], (hidden_size,), jnp.float32)
    be1 = 0.1 * jax.random.normal(ks[7], (hidden_size,), jnp.float32)
    g2 = 1.0 + 0.1 * jax.random.normal(ks[8], (hidden_size,), jnp.float32)
    be2 = 0.1 * jax.random.normal(ks[9], (hidden_size,), jnp.float32)
    return dict(w1=w1, b1=b1, g1=g1, be1=be1, w2=w2, b2=b2,
                g2=g2, be2=be2, w3=w3[:, 0], b3=b3[0])


def pack_params(p, state_size):
    """Host-side: fold LN1 affine into Linear2, fuse LN2 affine + Linear3, and
    transpose everything into the kernel's batch-on-lanes layout."""
    H = p["w2"].shape[0]
    w2p = p["g1"][:, None] * p["w2"]                 # W2' = diag(g1) @ W2
    b2p = p["b2"] + p["be1"] @ p["w2"]               # b2' = b2 + be1 @ W2
    c = p["g2"] * p["w3"]                            # gamma2 * w3
    sum_c = jnp.sum(c)
    kconst = jnp.dot(p["be2"], p["w3"]) + p["b3"]    # beta2 . w3 + b3
    zeros = jnp.zeros((H,), jnp.float32)
    vecs = jnp.stack(
        [p["b1"], b2p, c,
         jnp.full((H,), sum_c), jnp.full((H,), kconst),
         zeros, zeros, zeros], axis=1).astype(jnp.float32)     # (H, 8)
    return {
        "w1s_t": p["w1"][:state_size].T,             # (H, S)
        "w1a_t": p["w1"][state_size:].T,             # (H, A)
        "w2p_t": w2p.T,                              # (H, H)
        "vecs": vecs,                                # (H, 8)
    }


def q_reference(state, action, p):
    """Pure-JAX transcription of the torch forward (raw, unfolded params)."""
    x = jnp.concatenate([state, action], axis=1)

    def ln(v, g, b):
        mu = jnp.mean(v, axis=-1, keepdims=True)
        var = jnp.mean((v - mu) ** 2, axis=-1, keepdims=True)
        return (v - mu) * jax.lax.rsqrt(var + LN_EPS) * g + b

    def leaky(v):
        return jnp.where(v > 0, v, LEAKY_SLOPE * v)

    h = ln(leaky(x @ p["w1"] + p["b1"]), p["g1"], p["be1"])
    h = ln(leaky(h @ p["w2"] + p["b2"]), p["g2"], p["be2"])
    return h @ p["w3"][:, None] + p["b3"]


if __name__ == "__main__":
    STATE_SIZE, ACTION_SIZE, HIDDEN_SIZE = 12, 4, 32

    key = jax.random.PRNGKey(0)
    k_s, k_a, k_p = jax.random.split(key, 3)
    raw = init_raw_params(k_p, STATE_SIZE, ACTION_SIZE, HIDDEN_SIZE)
    params = pack_params(raw, STATE_SIZE)

    # Batched case: grid=(2,) with two 512-lane batch tiles (both v7x TCs busy).
    B = 1024
    state = jax.random.normal(k_s, (B, STATE_SIZE), jnp.float32)
    action = jax.random.normal(k_a, (B, ACTION_SIZE), jnp.float32)
    out = jax.block_until_ready(q_forward(state, action, params))
    ref = q_reference(state, action, raw)
    assert out.shape == (B, 1)
    assert jnp.allclose(out, ref, atol=1e-4, rtol=1e-4), \
        float(jnp.max(jnp.abs(out - ref)))

    # Tiny-batch case (single full-dim tile, masked lane store on output).
    out8 = jax.block_until_ready(q_forward(state[:8], action[:8], params))
    assert out8.shape == (8, 1)
    assert jnp.allclose(out8, ref[:8], atol=1e-4, rtol=1e-4), \
        float(jnp.max(jnp.abs(out8 - ref[:8])))

    print("KERNEL_OK")
</pallas_src>

<mosaic_0001>
module attributes {stable_mosaic.version = 11 : i64} {
  func.func @q_kernel(%arg0: i32, %arg1: memref<12x512xf32, #tpu.memory_space<vmem>>, %arg2: memref<4x512xf32, #tpu.memory_space<vmem>>, %arg3: memref<32x12xf32, #tpu.memory_space<vmem>>, %arg4: memref<32x4xf32, #tpu.memory_space<vmem>>, %arg5: memref<32x32xf32, #tpu.memory_space<vmem>>, %arg6: memref<32x8xf32, #tpu.memory_space<vmem>>, %arg7: memref<1x512xf32, #tpu.memory_space<vmem>>) attributes {dimension_semantics = [#tpu.dimension_semantics<parallel>], iteration_bounds = array<i64: 2>, scalar_prefetch = 0 : i64, scratch_operands = 0 : i64, tpu.core_type = #tpu.core_type<tc>, window_params = [{transform_indices = @transform_0, window_bounds = array<i64: 12, 512>}, {transform_indices = @transform_1, window_bounds = array<i64: 4, 512>}, {pipeline_mode = #tpu.pipeline_mode<synchronous>, transform_indices = @transform_2, window_bounds = array<i64: 32, 12>}, {pipeline_mode = #tpu.pipeline_mode<synchronous>, transform_indices = @transform_3, window_bounds = array<i64: 32, 4>}, {pipeline_mode = #tpu.pipeline_mode<synchronous>, transform_indices = @transform_4, window_bounds = array<i64: 32, 32>}, {pipeline_mode = #tpu.pipeline_mode<synchronous>, transform_indices = @transform_5, window_bounds = array<i64: 32, 8>}, {transform_indices = @transform_6, window_bounds = array<i64: 1, 512>}]} {
    %c0 = arith.constant 0 : index
    %c0_0 = arith.constant 0 : index
    %0 = vector.load %arg6[%c0, %c0_0] : memref<32x8xf32, #tpu.memory_space<vmem>>, vector<32x8xf32>
    %1 = vector.extract_strided_slice %0 {offsets = [0, 0], sizes = [32, 1], strides = [1, 1]} : vector<32x8xf32> to vector<32x1xf32>
    %2 = vector.extract_strided_slice %0 {offsets = [0, 1], sizes = [32, 1], strides = [1, 1]} : vector<32x8xf32> to vector<32x1xf32>
    %3 = vector.extract_strided_slice %0 {offsets = [0, 2], sizes = [32, 1], strides = [1, 1]} : vector<32x8xf32> to vector<32x1xf32>
    %4 = vector.extract_strided_slice %0 {offsets = [0, 3], sizes = [1, 1], strides = [1, 1]} : vector<32x8xf32> to vector<1x1xf32>
    %5 = vector.extract_strided_slice %0 {offsets = [0, 4], sizes = [1, 1], strides = [1, 1]} : vector<32x8xf32> to vector<1x1xf32>
    %c0_1 = arith.constant 0 : index
    %c0_2 = arith.constant 0 : index
    %6 = vector.load %arg3[%c0_1, %c0_2] : memref<32x12xf32, #tpu.memory_space<vmem>>, vector<32x12xf32>
    %c0_3 = arith.constant 0 : index
    %c0_4 = arith.constant 0 : index
    %7 = vector.load %arg1[%c0_3, %c0_4] : memref<12x512xf32, #tpu.memory_space<vmem>>, vector<12x512xf32>
    %cst = arith.constant dense<0.000000e+00> : vector<32x512xf32>
    %8 = tpu.matmul %6, %7, %cst {dimension_numbers = #tpu.dot_dimension_numbers<[1], [0], [0], [1], [0, 0, 1, 1], [], []>} : vector<32x12xf32>, vector<12x512xf32>, vector<32x512xf32> -> vector<32x512xf32>
    %c0_5 = arith.constant 0 : index
    %c0_6 = arith.constant 0 : index
    %9 = vector.load %arg4[%c0_5, %c0_6] : memref<32x4xf32, #tpu.memory_space<vmem>>, vector<32x4xf32>
    %c0_7 = arith.constant 0 : index
    %c0_8 = arith.constant 0 : index
    %10 = vector.load %arg2[%c0_7, %c0_8] : memref<4x512xf32, #tpu.memory_space<vmem>>, vector<4x512xf32>
    %cst_9 = arith.constant dense<0.000000e+00> : vector<32x512xf32>
    %11 = tpu.matmul %9, %10, %cst_9 {dimension_numbers = #tpu.dot_dimension_numbers<[1], [0], [0], [1], [0, 0, 1, 1], [], []>} : vector<32x4xf32>, vector<4x512xf32>, vector<32x512xf32> -> vector<32x512xf32>
    %12 = arith.addf %8, %11 : vector<32x512xf32>
    %13 = vector.broadcast %1 : vector<32x1xf32> to vector<32x512xf32>
    %14 = arith.addf %12, %13 : vector<32x512xf32>
    %cst_10 = arith.constant 0.00999999977 : f32
    %15 = vector.broadcast %cst_10 : f32 to vector<32x512xf32>
    %16 = arith.mulf %15, %14 : vector<32x512xf32>
    %17 = arith.maximumf %14, %16 : vector<32x512xf32>
    %cst_11 = arith.constant dense<0.000000e+00> : vector<512xf32>
    %18 = vector.multi_reduction <add>, %17, %cst_11 [0] : vector<32x512xf32> to vector<512xf32>
    %19 = vector.shape_cast %18 : vector<512xf32> to vector<1x512xf32>
    %cst_12 = arith.constant 3.125000e-02 : f32
    %20 = vector.broadcast %cst_12 : f32 to vector<1x512xf32>
    %21 = arith.mulf %19, %20 : vector<1x512xf32>
    %22 = arith.mulf %17, %17 : vector<32x512xf32>
    %cst_13 = arith.constant dense<0.000000e+00> : vector<512xf32>
    %23 = vector.multi_reduction <add>, %22, %cst_13 [0] : vector<32x512xf32> to vector<512xf32>
    %24 = vector.shape_cast %23 : vector<512xf32> to vector<1x512xf32>
    %cst_14 = arith.constant 3.125000e-02 : f32
    %25 = vector.broadcast %cst_14 : f32 to vector<1x512xf32>
    %26 = arith.mulf %24, %25 : vector<1x512xf32>
    %27 = vector.broadcast %21 : vector<1x512xf32> to vector<32x512xf32>
    %28 = arith.subf %17, %27 : vector<32x512xf32>
    %29 = arith.mulf %21, %21 : vector<1x512xf32>
    %30 = arith.subf %26, %29 : vector<1x512xf32>
    %cst_15 = arith.constant 9.99999974E-6 : f32
    %31 = vector.broadcast %cst_15 : f32 to vector<1x512xf32>
    %32 = arith.addf %30, %31 : vector<1x512xf32>
    %33 = math.rsqrt %32 : vector<1x512xf32>
    %34 = vector.broadcast %33 : vector<1x512xf32> to vector<32x512xf32>
    %35 = arith.mulf %28, %34 : vector<32x512xf32>
    %c0_16 = arith.constant 0 : index
    %c0_17 = arith.constant 0 : index
    %36 = vector.load %arg5[%c0_16, %c0_17] : memref<32x32xf32, #tpu.memory_space<vmem>>, vector<32x32xf32>
    %cst_18 = arith.constant dense<0.000000e+00> : vector<32x512xf32>
    %37 = tpu.matmul %36, %35, %cst_18 {dimension_numbers = #tpu.dot_dimension_numbers<[1], [0], [0], [1], [0, 0, 1, 1], [], []>} : vector<32x32xf32>, vector<32x512xf32>, vector<32x512xf32> -> vector<32x512xf32>
    %38 = vector.broadcast %2 : vector<32x1xf32> to vector<32x512xf32>
    %39 = arith.addf %37, %38 : vector<32x512xf32>
    %cst_19 = arith.constant 0.00999999977 : f32
    %40 = vector.broadcast %cst_19 : f32 to vector<32x512xf32>
    %41 = arith.mulf %40, %39 : vector<32x512xf32>
    %42 = arith.maximumf %39, %41 : vector<32x512xf32>
    %cst_20 = arith.constant dense<0.000000e+00> : vector<512xf32>
    %43 = vector.multi_reduction <add>, %42, %cst_20 [0] : vector<32x512xf32> to vector<512xf32>
    %44 = vector.shape_cast %43 : vector<512xf32> to vector<1x512xf32>
    %cst_21 = arith.constant 3.125000e-02 : f32
    %45 = vector.broadcast %cst_21 : f32 to vector<1x512xf32>
    %46 = arith.mulf %44, %45 : vector<1x512xf32>
    %47 = arith.mulf %42, %42 : vector<32x512xf32>
    %cst_22 = arith.constant dense<0.000000e+00> : vector<512xf32>
    %48 = vector.multi_reduction <add>, %47, %cst_22 [0] : vector<32x512xf32> to vector<512xf32>
    %49 = vector.shape_cast %48 : vector<512xf32> to vector<1x512xf32>
    %cst_23 = arith.constant 3.125000e-02 : f32
    %50 = vector.broadcast %cst_23 : f32 to vector<1x512xf32>
    %51 = arith.mulf %49, %50 : vector<1x512xf32>
    %52 = arith.mulf %46, %46 : vector<1x512xf32>
    %53 = arith.subf %51, %52 : vector<1x512xf32>
    %cst_24 = arith.constant 9.99999974E-6 : f32
    %54 = vector.broadcast %cst_24 : f32 to vector<1x512xf32>
    %55 = arith.addf %53, %54 : vector<1x512xf32>
    %56 = math.rsqrt %55 : vector<1x512xf32>
    %57 = vector.broadcast %3 : vector<32x1xf32> to vector<32x512xf32>
    %58 = arith.mulf %42, %57 : vector<32x512xf32>
    %cst_25 = arith.constant dense<0.000000e+00> : vector<512xf32>
    %59 = vector.multi_reduction <add>, %58, %cst_25 [0] : vector<32x512xf32> to vector<512xf32>
    %60 = vector.shape_cast %59 : vector<512xf32> to vector<1x512xf32>
    %61 = vector.broadcast %4 : vector<1x1xf32> to vector<1x512xf32>
    %62 = arith.mulf %46, %61 : vector<1x512xf32>
    %63 = arith.subf %60, %62 : vector<1x512xf32>
    %64 = arith.mulf %56, %63 : vector<1x512xf32>
    %65 = vector.broadcast %5 : vector<1x1xf32> to vector<1x512xf32>
    %66 = arith.addf %64, %65 : vector<1x512xf32>
    %c0_26 = arith.constant 0 : index
    %c0_27 = arith.constant 0 : index
    %67 = vector.load %arg7[%c0_26, %c0_27] : memref<1x512xf32, #tpu.memory_space<vmem>>, vector<1x512xf32>
    tpu.vector_store %arg7[%c0_26, %c0_27], %66 {strides = array<i32>} : memref<1x512xf32, #tpu.memory_space<vmem>>, vector<1x512xf32>,
    return
  }
  func.func @transform_0(%arg0: i32) -> (i32, i32) {
    %c0_i32 = arith.constant 0 : i32
    %c0_i32_0 = arith.constant 0 : i32
    return %c0_i32, %arg0 : i32, i32
  }
  func.func @transform_1(%arg0: i32) -> (i32, i32) {
    %c0_i32 = arith.constant 0 : i32
    %c0_i32_0 = arith.constant 0 : i32
    return %c0_i32, %arg0 : i32, i32
  }
  func.func @transform_2(%arg0: i32) -> (i32, i32) {
    %c0_i32 = arith.constant 0 : i32
    %c0_i32_0 = arith.constant 0 : i32
    %c0_i32_1 = arith.constant 0 : i32
    return %c0_i32, %c0_i32_0 : i32, i32
  }
  func.func @transform_3(%arg0: i32) -> (i32, i32) {
    %c0_i32 = arith.constant 0 : i32
    %c0_i32_0 = arith.constant 0 : i32
    %c0_i32_1 = arith.constant 0 : i32
    return %c0_i32, %c0_i32_0 : i32, i32
  }
  func.func @transform_4(%arg0: i32) -> (i32, i32) {
    %c0_i32 = arith.constant 0 : i32
    %c0_i32_0 = arith.constant 0 : i32
    %c0_i32_1 = arith.constant 0 : i32
    return %c0_i32, %c0_i32_0 : i32, i32
  }
  func.func @transform_5(%arg0: i32) -> (i32, i32) {
    %c0_i32 = arith.constant 0 : i32
    %c0_i32_0 = arith.constant 0 : i32
    %c0_i32_1 = arith.constant 0 : i32
    return %c0_i32, %c0_i32_0 : i32, i32
  }
  func.func @transform_6(%arg0: i32) -> (i32, i32) {
    %c0_i32 = arith.constant 0 : i32
    %c0_i32_0 = arith.constant 0 : i32
    return %c0_i32, %arg0 : i32, i32
  }
}

</mosaic_0001>

<llo_original>
// kernel: q_forward.1
$region0: #{q_forward.1}
  #allocation0 [shape = 'u32[]', space=smem, size = 0x4, offset = 0x4, fixed_abs, tag = 'smem constant byte address 0x4 - core index']
  #allocation1 [shape = 'u32[72,128]{1,0:T(1,128)}', space=vmem, size = 0x9000, scoped, tag = 'internal scratch']
  %s0 = inlined_call_operand.hbm [shape: f32[12,1024], index: 0, kind: input, shape index: {}]
  %s1 = inlined_call_operand.vmem [shape: f32[4,1024], index: 1, kind: input, shape index: {}]
  %s2 = inlined_call_operand.vmem [shape: f32[32,12], index: 2, kind: input, shape index: {}]
  %s3 = inlined_call_operand.vmem [shape: f32[32,4], index: 3, kind: input, shape index: {}]
  %s4 = inlined_call_operand.vmem [shape: f32[32,32], index: 4, kind: input, shape index: {}]
  %s5 = inlined_call_operand.vmem [shape: f32[32,8], index: 5, kind: input, shape index: {}]
  %s6 = inlined_call_operand.hbm [shape: f32[1,1024], index: 6, kind: output, shape index: {}]
  %s7 = sld [smem:[#allocation0]]
  $region61: #{q_forward.1} parent=0
    _
  %s9 = ssub.s32 1, %s7
  %s10 = scalar_select 0, %s9, %s7
  $region1: #{q_forward.1} parent=0
    #allocation2 [shape = 'u8[65536]{0}', space=vmem, size = 0x10000, scoped, tag = 'input window, operand 0']
    #allocation3 [shape = 's32[2]{0}', space=sflag, size = 0x8, scoped, tag = 'scoped memory for q_forward.1']
    #allocation4 [shape = 's32[2]{0}', space=sflag, size = 0x8, scoped, tag = 'scoped memory for q_forward.1']
    #allocation5 [shape = 'u8[4096]{0}', space=vmem, size = 0x1000, scoped, tag = 'output window, operand 0']
    %11 = vsyncpa [#allocation3], 0
    %s12 = scalar_lea.sflag [#allocation3], 1
    %13 = vsyncpa %s12, 0
    %14 = vsyncpa [#allocation4], 0
    %s15 = scalar_lea.sflag [#allocation4], 1
    %16 = vsyncpa %s15, 0
    loop: start=0, step=1, limit=4
    $region2: #{q_forward.1} parent=1 // loop_pre_header
      _
    $region3: #{q_forward.1} parent=1 // loop_header
      %s18 = sphi 0, %s22
      %p19 = scmp.ge.s32.totalorder %s18, 4
      %s28 = sphi 0, %s30
      %s31 = sphi 0, %s28
      %s32 = sphi 0, %s31
      %s48 = sphi 0, %s32
      %s54 = sphi 0, %s56
      %s57 = sphi 0, %s54
      %s58 = sphi 0, %s57
      %s74 = sphi 0, %s58
      %s78 = sphi 0, %s78
      %s80 = sphi 0, %s78
      %s81 = sphi 0, %s80
      %s95 = sphi 0, %s81
      %s99 = sphi 0, %s99
      %s101 = sphi 0, %s99
      %s102 = sphi 0, %s101
      %s116 = sphi 0, %s102
      %s120 = sphi 0, %s120
      %s122 = sphi 0, %s120
      %s123 = sphi 0, %s122
      %s137 = sphi 0, %s123
      %s141 = sphi 0, %s141
      %s143 = sphi 0, %s141
      %s144 = sphi 0, %s143
      %s158 = sphi 0, %s144
      %s164 = sphi 0, %s166
      %s167 = sphi 0, %s164
      %s168 = sphi 0, %s167
      %s184 = sphi 0, %s168
    $region4: #{q_forward.1} parent=1 // loop_header_branch
      %21 = sbr.rel (%p19) target = $region8
    $region5: #{q_forward.1} parent=1 // loop_body
      %s23 = ssub.s32 %s18, 1
      %s24 = ssub.s32 %s18, 2
      %s25 = sadd.s32 %s18, 1
      %s26 = ssub.s32 %s18, %s25
      %p27 = scmp.eq.s32.totalorder %s26, 0
      %s29 = sadd.s32 %s28, 1
      %s30 = scalar_select %p27, %s28, %s29
      %p33 = pneg %p27
      %p34 = scmp.eq.s32.totalorder %s18, 1
      %p35 = por %p33, %p34
      %p36 = scmp.ne.s32.totalorder %s28, %s31
      %p37 = scmp.eq.s32.totalorder %s18, 0
      %p38 = por %p36, %p37
      %p39 = scmp.ne.s32.totalorder %s28, %s31
      %p40 = scmp.eq.s32.totalorder %s23, 1
      %p41 = por %p39, %p40
      %p42 = scmp.ne.s32.totalorder %s31, %s32
      %p43 = scmp.eq.s32.totalorder %s23, 0
      %p44 = por %p42, %p43
      %p45 = scmp.ne.s32.totalorder %s31, %s32
      %p46 = scmp.eq.s32.totalorder %s24, 1
      %p47 = por %p45, %p46
      %p49 = scmp.ne.s32.totalorder %s32, %s48
      %p50 = scmp.eq.s32.totalorder %s24, 0
      %p51 = por %p49, %p50
      %s52 = ssub.s32 %s18, %s25
      %p53 = scmp.eq.s32.totalorder %s52, 0
      %s55 = sadd.s32 %s54, 1
      %s56 = scalar_select %p53, %s54, %s55
      %p59 = pneg %p53
      %p60 = scmp.eq.s32.totalorder %s18, 1
      %p61 = por %p59, %p60
      %p62 = scmp.ne.s32.totalorder %s54, %s57
      %p63 = scmp.eq.s32.totalorder %s18, 0
      %p64 = por %p62, %p63
      %p65 = scmp.ne.s32.totalorder %s54, %s57
      %p66 = scmp.eq.s32.totalorder %s23, 1
      %p67 = por %p65, %p66
      %p68 = scmp.ne.s32.totalorder %s57, %s58
      %p69 = scmp.eq.s32.totalorder %s23, 0
      %p70 = por %p68, %p69
      %p71 = scmp.ne.s32.totalorder %s57, %s58
      %p72 = scmp.eq.s32.totalorder %s24, 1
      %p73 = por %p71, %p72
      %p75 = scmp.ne.s32.totalorder %s58, %s74
      %p76 = scmp.eq.s32.totalorder %s24, 0
      %p77 = por %p75, %p76
      %s79 = sadd.s32 %s78, 1
      %p82 = scmp.eq.s32.totalorder %s18, 1
      %p83 = scmp.ne.s32.totalorder %s78, %s80
      %p84 = scmp.eq.s32.totalorder %s18, 0
      %p85 = por %p83, %p84
      %p86 = scmp.ne.s32.totalorder %s78, %s80
      %p87 = scmp.eq.s32.totalorder %s23, 1
      %p88 = por %p86, %p87
      %p89 = scmp.ne.s32.totalorder %s80, %s81
      %p90 = scmp.eq.s32.totalorder %s23, 0
      %p91 = por %p89, %p90
      %p92 = scmp.ne.s32.totalorder %s80, %s81
      %p93 = scmp.eq.s32.totalorder %s24, 1
      %p94 = por %p92, %p93
      %p96 = scmp.ne.s32.totalorder %s81, %s95
      %p97 = scmp.eq.s32.totalorder %s24, 0
      %p98 = por %p96, %p97
      %s100 = sadd.s32 %s99, 1
      %p103 = scmp.eq.s32.totalorder %s18, 1
      %p104 = scmp.ne.s32.totalorder %s99, %s101
      %p105 = scmp.eq.s32.totalorder %s18, 0
      %p106 = por %p104, %p105
      %p107 = scmp.ne.s32.totalorder %s99, %s101
      %p108 = scmp.eq.s32.totalorder %s23, 1
      %p109 = por %p107, %p108
      %p110 = scmp.ne.s32.totalorder %s101, %s102
      %p111 = scmp.eq.s32.totalorder %s23, 0
      %p112 = por %p110, %p111
      %p113 = scmp.ne.s32.totalorder %s101, %s102
      %p114 = scmp.eq.s32.totalorder %s24, 1
      %p115 = por %p113, %p114
      %p117 = scmp.ne.s32.totalorder %s102, %s116
      %p118 = scmp.eq.s32.totalorder %s24, 0
      %p119 = por %p117, %p118
      %s121 = sadd.s32 %s120, 1
      %p124 = scmp.eq.s32.totalorder %s18, 1
      %p125 = scmp.ne.s32.totalorder %s120, %s122
      %p126 = scmp.eq.s32.totalorder %s18, 0
      %p127 = por %p125, %p126
      %p128 = scmp.ne.s32.totalorder %s120, %s122
      %p129 = scmp.eq.s32.totalorder %s23, 1
      %p130 = por %p128, %p129
      %p131 = scmp.ne.s32.totalorder %s122, %s123
      %p132 = scmp.eq.s32.totalorder %s23, 0
      %p133 = por %p131, %p132
      %p134 = scmp.ne.s32.totalorder %s122, %s123
      %p135 = scmp.eq.s32.totalorder %s24, 1
      %p136 = por %p134, %p135
      %p138 = scmp.ne.s32.totalorder %s123, %s137
      %p139 = scmp.eq.s32.totalorder %s24, 0
      %p140 = por %p138, %p139
      %s142 = sadd.s32 %s141, 1
      %p145 = scmp.eq.s32.totalorder %s18, 1
      %p146 = scmp.ne.s32.totalorder %s141, %s143
      %p147 = scmp.eq.s32.totalorder %s18, 0
      %p148 = por %p146, %p147
      %p149 = scmp.ne.s32.totalorder %s141, %s143
      %p150 = scmp.eq.s32.totalorder %s23, 1
      %p151 = por %p149, %p150
      %p152 = scmp.ne.s32.totalorder %s143, %s144
      %p153 = scmp.eq.s32.totalorder %s23, 0
      %p154 = por %p152, %p153
      %p155 = scmp.ne.s32.totalorder %s143, %s144
      %p156 = scmp.eq.s32.totalorder %s24, 1
      %p157 = por %p155, %p156
      %p159 = scmp.ne.s32.totalorder %s144, %s158
      %p160 = scmp.eq.s32.totalorder %s24, 0
      %p161 = por %p159, %p160
      %s162 = ssub.s32 %s18, %s25
      %p163 = scmp.eq.s32.totalorder %s162, 0
      %s165 = sadd.s32 %s164, 1
      %s166 = scalar_select %p163, %s164, %s165
      %p169 = pneg %p163
      %p170 = scmp.eq.s32.totalorder %s18, 1
      %p171 = por %p169, %p170
      %p172 = scmp.ne.s32.totalorder %s164, %s167
      %p173 = scmp.eq.s32.totalorder %s18, 0
      %p174 = por %p172, %p173
      %p175 = scmp.ne.s32.totalorder %s164, %s167
      %p176 = scmp.eq.s32.totalorder %s23, 1
      %p177 = por %p175, %p176
      %p178 = scmp.ne.s32.totalorder %s167, %s168
      %p179 = scmp.eq.s32.totalorder %s23, 0
      %p180 = por %p178, %p179
      %p181 = scmp.ne.s32.totalorder %s167, %s168
      %p182 = scmp.eq.s32.totalorder %s24, 1
      %p183 = por %p181, %p182
      %p185 = scmp.ne.s32.totalorder %s168, %s184
      %p186 = scmp.eq.s32.totalorder %s24, 0
      %p187 = por %p185, %p186
      %p188 = scmp.le.s32.totalorder 1, %s18
      %p189 = scmp.lt.s32.totalorder %s18, 3
      %p190 = pnand %p188, %p189
      %p191 = pneg %p190
      // Predicated region
      $region9: #{q_forward.1} parent=5 // pred_check
        _
      $region10: #{q_forward.1} parent=5 // pred_check_branch
        %193 = sbr.rel (%p190) target = $region12
      $region11: #{q_forward.1} parent=5 // pred_region
        %s194 = ssub.s32 %s18, 1
        // Predicated region
        $region13: #{q_forward.1} parent=11 // pred_check
          %p195 = pneg %p91
        $region14: #{q_forward.1} parent=11 // pred_check_branch
          %197 = sbr.rel (%p195) target = $region16
        $region15: #{q_forward.1} parent=11 // pred_region
          _
        $region16: #{q_forward.1} parent=11 // pred_fallthru
          _
        // Predicated region
        $region17: #{q_forward.1} parent=11 // pred_check
          %p198 = pneg %p112
        $region18: #{q_forward.1} parent=11 // pred_check_branch
          %200 = sbr.rel (%p198) target = $region20
        $region19: #{q_forward.1} parent=11 // pred_region
          _
        $region20: #{q_forward.1} parent=11 // pred_fallthru
          _
        // Predicated region
        $region21: #{q_forward.1} parent=11 // pred_check
          %p201 = pneg %p133
        $region22: #{q_forward.1} parent=11 // pred_check_branch
          %203 = sbr.rel (%p201) target = $region24
        $region23: #{q_forward.1} parent=11 // pred_region
          _
        $region24: #{q_forward.1} parent=11 // pred_fallthru
          _
        // Predicated region
        $region25: #{q_forward.1} parent=11 // pred_check
          %p204 = pneg %p154
        $region26: #{q_forward.1} parent=11 // pred_check_branch
          %206 = sbr.rel (%p204) target = $region28
        $region27: #{q_forward.1} parent=11 // pred_region
          _
        $region28: #{q_forward.1} parent=11 // pred_fallthru
          _
      $region12: #{q_forward.1} parent=5 // pred_fallthru
        _
      %p207 = scmp.lt.s32.totalorder %s18, 2
      // Predicated region
      $region29: #{q_forward.1} parent=5 // pred_check
        %p208 = pneg %p207
      $region30: #{q_forward.1} parent=5 // pred_check_branch
        %210 = sbr.rel (%p208) target = $region32
      $region31: #{q_forward.1} parent=5 // pred_region
        // Predicated region
        $region33: #{q_forward.1} parent=31 // pred_check
          %p211 = pneg %p38
        $region34: #{q_forward.1} parent=31 // pred_check_branch
          %213 = sbr.rel (%p211) target = $region36
        $region35: #{q_forward.1} parent=31 // pred_region
          %s214 = sand.u32 %s28, 1
          %s215 = scalar_lea.sflag [#allocation3], %s214
          %s216 = sand.u32 %s28, 1
          %s217 = smul.addr %s216, 64
          %s218 = scalar_lea.vmem [#allocation2], %s217
          %s219 = smul.u32 4, %s18
          %221 = vsyncadd %s215, 0
          %s222 = smul.addr %s219, 8
          %s223 = scalar_lea.hbm %s0, %s222
          %s224 = sshll.u32 %s223, 4
          %s225 = int_to_ptr.hbm [resolvable:$true] %s224
          %s226 = sshll.u32 %s218, 4
          %s227 = int_to_ptr.vmem [resolvable:$true] %s226
          %232 = dma.hbm_to_vmem [thread:$0]  %s225, 1024, %s227, %s215, 1024, 512, 32
        $region36: #{q_forward.1} parent=31 // pred_fallthru
          _
        // Predicated region
        $region37: #{q_forward.1} parent=31 // pred_check
          %p233 = pneg %p64
        $region38: #{q_forward.1} parent=31 // pred_check_branch
          %235 = sbr.rel (%p233) target = $region40
        $region39: #{q_forward.1} parent=31 // pred_region
          %s236 = smul.u32 4, %s18
          %p237 = scmp.lt.s32.totalorder %s236, 7
          %s238 = scalar_select %p237, %s236, 7
          %s239 = smul.addr %s238, 4
          %s240 = scalar_lea.vmem %s1, %s239
          %s241 = smul.u32 4, %s18
        $region40: #{q_forward.1} parent=31 // pred_fallthru
          _
      $region32: #{q_forward.1} parent=5 // pred_fallthru
        _
      %p242 = scmp.le.s32.totalorder 1, %s18
      %p243 = scmp.lt.s32.totalorder %s18, 3
      %p244 = pnand %p242, %p243
      %p245 = pneg %p244
      // Predicated region
      $region41: #{q_forward.1} parent=5 // pred_check
        _
      $region42: #{q_forward.1} parent=5 // pred_check_branch
        %247 = sbr.rel (%p244) target = $region44
      $region43: #{q_forward.1} parent=5 // pred_region
        %s248 = ssub.s32 %s18, 1
        %s249 = sand.u32 %s31, 1
        %s250 = scalar_lea.sflag [#allocation3], %s249
        %s251 = sand.u32 %s31, 1
        %s252 = smul.addr %s251, 64
        %s253 = scalar_lea.vmem [#allocation2], %s252
        // Predicated region
        $region45: #{q_forward.1} parent=43 // pred_check
          %p254 = pneg %p44
        $region46: #{q_forward.1} parent=43 // pred_check_branch
          %256 = sbr.rel (%p254) target = $region48
        $region47: #{q_forward.1} parent=43 // pred_region
          %258 = dma.done %s250, 1024
        $region48: #{q_forward.1} parent=43 // pred_fallthru
          _
        %s259 = sand.u32 %s31, 1
        %s260 = scalar_lea.sflag [#allocation3], %s259
        %s261 = sand.u32 %s31, 1
        %s262 = smul.addr %s261, 64
        %s263 = scalar_lea.vmem [#allocation2], %s262
        %p264 = pneg %p44
        %p265 = pneg %p41
        %s266 = smul.u32 4, %s23
        %p267 = scmp.lt.s32.totalorder %s266, 7
        %s268 = scalar_select %p267, %s266, 7
        %s269 = smul.addr %s268, 4
        %s270 = scalar_lea.vmem %s1, %s269
        %p271 = pneg %p70
        %p272 = pneg %p67
        %p273 = pneg %p91
        %p274 = pneg %p88
        %p275 = pneg %p112
        %p276 = pneg %p109
        %p277 = pneg %p133
        %p278 = pneg %p130
        %p279 = pneg %p154
        %p280 = pneg %p151
        %p281 = pneg %p180
        %p282 = pneg %p177
        %s283 = sand.u32 %s167, 1
        %s284 = scalar_lea.sflag [#allocation4], %s283
        %s285 = sand.u32 %s167, 1
        %s286 = smul.addr %s285, 4
        %s287 = scalar_lea.vmem [#allocation5], %s286
        %s288 = smul.u32 4, %s23
        %s289 = smul.u32 4, %s23
        %p290 = scmp.lt.s32.totalorder %s289, 7
        %s291 = scalar_select %p290, %s289, 7
        %s292 = smul.addr %s291, 4
        %s293 = scalar_lea.vmem %s1, %s292
        %s294 = smul.u32 4, %s23
        %s295 = smul.u32 4, %s23
        %v296 = vld [vmem:[%s5] sm:$0xff]
        %v297 = vld [vmem:[%s5 + $0x8] sm:$0xff]
        %v298 = vld [vmem:[%s5 + $0x10] sm:$0xff]
        %v299 = vld [vmem:[%s5 + $0x18] sm:$0xff]
        %v300 = vld [vmem:[%s2] sm:$0xff]
        %v301 = vld [vmem:[%s2 + $0x8] sm:$0xff]
        %v302 = vld [vmem:[%s2 + $0x10] sm:$0xff]
        %v303 = vld [vmem:[%s2 + $0x18] sm:$0xff]
        %v304 = vld [vmem:[%s253] sm:$0xff]
        %v305 = vld [vmem:[%s253 + $0x8] sm:$0xff]
        %v306 = vld [vmem:[%s253 + $0x10] sm:$0xff]
        %v307 = vld [vmem:[%s253 + $0x18] sm:$0xff]
        %v308 = vld [vmem:[%s253 + $0x20] sm:$0xf]
        %v309 = vld [vmem:[%s253 + $0x28] sm:$0xf]
        %v310 = vld [vmem:[%s253 + $0x30] sm:$0xf]
        %v311 = vld [vmem:[%s253 + $0x38] sm:$0xf]
        %v312 = vld [vmem:[%s3] sm:$0xff]
        %v313 = vld [vmem:[%s3 + $0x8] sm:$0xff]
        %v314 = vld [vmem:[%s3 + $0x10] sm:$0xff]
        %v315 = vld [vmem:[%s3 + $0x18] sm:$0xff]
        %v316 = vld [vmem:[%s293] sm:$0xff]
        %v317 = vld [vmem:[%s293 + $0x8] sm:$0xff]
        %320 = vst [vmem:[#allocation1] ss:$2 sm:$0xff] %v316
        %s321 = scalar_lea.vmem [#allocation1], 16
        %322 = vst [vmem:[%s321] ss:$2 sm:$0xff] %v317
        %v323 = vld.sshfl [vmem:[#allocation1] sm:$0xff pattern:$0x75316420]
        %v324 = vld.sshfl [vmem:[#allocation1 + $0x8] sm:$0xff pattern:$0x75316420]
        %v325 = vld.sshfl [vmem:[#allocation1 + $0x10] sm:$0xff pattern:$0x75316420]
        %v326 = vld.sshfl [vmem:[#allocation1 + $0x18] sm:$0xff pattern:$0x75316420]
        %vm327 = vcmask 31744
        %v329 = vsel %vm327, %v312, 0
        %v332 = vsel %vm327, %v313, 0
        %v335 = vsel %vm327, %v314, 0
        %v338 = vsel %vm327, %v315, 0
        %vm340 = vcmask 1043456
        %v341 = vsel %vm340, %v323, 0
        %v343 = vsel %vm340, %v324, 0
        %v345 = vsel %vm340, %v325, 0
        %v347 = vsel %vm340, %v326, 0
        %349 = vmatpush.msra.mxu0 0.0
        %350 = vmatpush.msra.mxu0 0.0
        %351 = vmatpush.msra.mxu0 0.0
        %352 = vmatpush.msra.mxu0 0.0
        %353 = vmatpush.msra.mxu0 0.0
        %354 = vmatpush.msra.mxu0 0.0
        %355 = vmatpush.msra.mxu0 0.0
        %356 = vmatpush.msra.mxu0 0.0
        %357 = vmatpush.msra.mxu0 0.0
        %358 = vmatpush.msra.mxu0 0.0
        %359 = vmatpush.msra.mxu0 0.0
        %360 = vmatpush.msra.mxu0 0.0
        %361 = vmatpush.msra.mxu0 0.0
        %362 = vmatpush.msra.mxu0 0.0
        %363 = vmatpush.msra.mxu0 0.0
        %364 = vmatpush.msra.mxu0 %v341
        %365 = vmatmul.f32.gmra.mxu0 %v329
        %v366 = vpop.f32.mrf.mxu0
        %v367 = vadd.f32 0.0, %v366
        %368 = vmatmul.f32.gmra.mxu0 %v332
        %v369 = vpop.f32.mrf.mxu0
        %v370 = vadd.f32 0.0, %v369
        %371 = vmatmul.f32.gmra.mxu0 %v335
        %v372 = vpop.f32.mrf.mxu0
        %v373 = vadd.f32 0.0, %v372
        %374 = vmatmul.f32.gmra.mxu0 %v338
        %v375 = vpop.f32.mrf.mxu0
        %v376 = vadd.f32 0.0, %v375
        %377 = vdwg.mxu0
        %378 = vmatpush.msra.mxu0 0.0
        %379 = vmatpush.msra.mxu0 0.0
        %380 = vmatpush.msra.mxu0 0.0
        %381 = vmatpush.msra.mxu0 0.0
        %382 = vmatpush.msra.mxu0 0.0
        %383 = vmatpush.msra.mxu0 0.0
        %384 = vmatpush.msra.mxu0 0.0
        %385 = vmatpush.msra.mxu0 0.0
        %386 = vmatpush.msra.mxu0 0.0
        %387 = vmatpush.msra.mxu0 0.0
        %388 = vmatpush.msra.mxu0 0.0
        %389 = vmatpush.msra.mxu0 0.0
        %390 = vmatpush.msra.mxu0 0.0
        %391 = vmatpush.msra.mxu0 0.0
        %392 = vmatpush.msra.mxu0 0.0
        %393 = vmatpush.msra.mxu0 %v343
        %394 = vmatmul.f32.gmra.mxu0 %v329
        %v395 = vpop.f32.mrf.mxu0
        %v396 = vadd.f32 0.0, %v395
        %397 = vmatmul.f32.gmra.mxu0 %v332
        %v398 = vpop.f32.mrf.mxu0
        %v399 = vadd.f32 0.0, %v398
        %400 = vmatmul.f32.gmra.mxu0 %v335
        %v401 = vpop.f32.mrf.mxu0
        %v402 = vadd.f32 0.0, %v401
        %403 = vmatmul.f32.gmra.mxu0 %v338
        %v404 = vpop.f32.mrf.mxu0
        %v405 = vadd.f32 0.0, %v404
        %406 = vdwg.mxu0
        %407 = vmatpush.msra.mxu0 0.0
        %408 = vmatpush.msra.mxu0 0.0
        %409 = vmatpush.msra.mxu0 0.0
        %410 = vmatpush.msra.mxu0 0.0
        %411 = vmatpush.msra.mxu0 0.0
        %412 = vmatpush.msra.mxu0 0.0
        %413 = vmatpush.msra.mxu0 0.0
        %414 = vmatpush.msra.mxu0 0.0
        %415 = vmatpush.msra.mxu0 0.0
        %416 = vmatpush.msra.mxu0 0.0
        %417 = vmatpush.msra.mxu0 0.0
        %418 = vmatpush.msra.mxu0 0.0
        %419 = vmatpush.msra.mxu0 0.0
        %420 = vmatpush.msra.mxu0 0.0
        %421 = vmatpush.msra.mxu0 0.0
        %422 = vmatpush.msra.mxu0 %v345
        %423 = vmatmul.f32.gmra.mxu0 %v329
        %v424 = vpop.f32.mrf.mxu0
        %v425 = vadd.f32 0.0, %v424
        %426 = vmatmul.f32.gmra.mxu0 %v332
        %v427 = vpop.f32.mrf.mxu0
        %v428 = vadd.f32 0.0, %v427
        %429 = vmatmul.f32.gmra.mxu0 %v335
        %v430 = vpop.f32.mrf.mxu0
        %v431 = vadd.f32 0.0, %v430
        %432 = vmatmul.f32.gmra.mxu0 %v338
        %v433 = vpop.f32.mrf.mxu0
        %v434 = vadd.f32 0.0, %v433
        %435 = vdwg.mxu0
        %436 = vmatpush.msra.mxu0 0.0
        %437 = vmatpush.msra.mxu0 0.0
        %438 = vmatpush.msra.mxu0 0.0
        %439 = vmatpush.msra.mxu0 0.0
        %440 = vmatpush.msra.mxu0 0.0
        %441 = vmatpush.msra.mxu0 0.0
        %442 = vmatpush.msra.mxu0 0.0
        %443 = vmatpush.msra.mxu0 0.0
        %444 = vmatpush.msra.mxu0 0.0
        %445 = vmatpush.msra.mxu0 0.0
        %446 = vmatpush.msra.mxu0 0.0
        %447 = vmatpush.msra.mxu0 0.0
        %448 = vmatpush.msra.mxu0 0.0
        %449 = vmatpush.msra.mxu0 0.0
        %450 = vmatpush.msra.mxu0 0.0
        %451 = vmatpush.msra.mxu0 %v347
        %452 = vmatmul.f32.gmra.mxu0 %v329
        %v453 = vpop.f32.mrf.mxu0
        %v454 = vadd.f32 0.0, %v453
        %455 = vmatmul.f32.gmra.mxu0 %v332
        %v456 = vpop.f32.mrf.mxu0
        %v457 = vadd.f32 0.0, %v456
        %458 = vmatmul.f32.gmra.mxu0 %v335
        %v459 = vpop.f32.mrf.mxu0
        %v460 = vadd.f32 0.0, %v459
        %461 = vmatmul.f32.gmra.mxu0 %v338
        %v462 = vpop.f32.mrf.mxu0
        %v463 = vadd.f32 0.0, %v462
        %464 = vdwg.mxu0
        %vm465 = vcmask 97280
        %v467 = vsel %vm465, %v300, 0
        %v470 = vsel %vm465, %v301, 0
        %v473 = vsel %vm465, %v302, 0
        %v476 = vsel %vm465, %v303, 0
        %v479 = vsel %vm340, %v308, 0
        %v482 = vsel %vm340, %v309, 0
        %v485 = vsel %vm340, %v310, 0
        %v488 = vsel %vm340, %v311, 0
        %490 = vmatpush.msra.mxu0 0.0
        %491 = vmatpush.msra.mxu0 0.0
        %492 = vmatpush.msra.mxu0 0.0
        %493 = vmatpush.msra.mxu0 0.0
        %494 = vmatpush.msra.mxu0 0.0
        %495 = vmatpush.msra.mxu0 0.0
        %496 = vmatpush.msra.mxu0 0.0
        %497 = vmatpush.msra.mxu0 0.0
        %498 = vmatpush.msra.mxu0 0.0
        %499 = vmatpush.msra.mxu0 0.0
        %500 = vmatpush.msra.mxu0 0.0
        %501 = vmatpush.msra.mxu0 0.0
        %502 = vmatpush.msra.mxu0 0.0
        %503 = vmatpush.msra.mxu0 0.0
        %504 = vmatpush.msra.mxu0 %v479
        %505 = vmatpush.msra.mxu0 %v304
        %506 = vmatmul.f32.gmra.mxu0 %v467
        %v507 = vpop.f32.mrf.mxu0
        %v508 = vadd.f32 %v367, %v507
        %509 = vmatmul.f32.gmra.mxu0 %v470
        %v510 = vpop.f32.mrf.mxu0
        %v511 = vadd.f32 %v370, %v510
        %512 = vmatmul.f32.gmra.mxu0 %v473
        %v513 = vpop.f32.mrf.mxu0
        %v514 = vadd.f32 %v373, %v513
        %515 = vmatmul.f32.gmra.mxu0 %v476
        %v516 = vpop.f32.mrf.mxu0
        %v517 = vadd.f32 %v376, %v516
        %518 = vdwg.mxu0
        %519 = vmatpush.msra.mxu0 0.0
        %520 = vmatpush.msra.mxu0 0.0
        %521 = vmatpush.msra.mxu0 0.0
        %522 = vmatpush.msra.mxu0 0.0
        %523 = vmatpush.msra.mxu0 0.0
        %524 = vmatpush.msra.mxu0 0.0
        %525 = vmatpush.msra.mxu0 0.0
        %526 = vmatpush.msra.mxu0 0.0
        %527 = vmatpush.msra.mxu0 0.0
        %528 = vmatpush.msra.mxu0 0.0
        %529 = vmatpush.msra.mxu0 0.0
        %530 = vmatpush.msra.mxu0 0.0
        %531 = vmatpush.msra.mxu0 0.0
        %532 = vmatpush.msra.mxu0 0.0
        %533 = vmatpush.msra.mxu0 %v482
        %534 = vmatpush.msra.mxu0 %v305
        %535 = vmatmul.f32.gmra.mxu0 %v467
        %v536 = vpop.f32.mrf.mxu0
        %v537 = vadd.f32 %v396, %v536
        %538 = vmatmul.f32.gmra.mxu0 %v470
        %v539 = vpop.f32.mrf.mxu0
        %v540 = vadd.f32 %v399, %v539
        %541 = vmatmul.f32.gmra.mxu0 %v473
        %v542 = vpop.f32.mrf.mxu0
        %v543 = vadd.f32 %v402, %v542
        %544 = vmatmul.f32.gmra.mxu0 %v476
        %v545 = vpop.f32.mrf.mxu0
        %v546 = vadd.f32 %v405, %v545
        %547 = vdwg.mxu0
        %548 = vmatpush.msra.mxu0 0.0
        %549 = vmatpush.msra.mxu0 0.0
        %550 = vmatpush.msra.mxu0 0.0
        %551 = vmatpush.msra.mxu0 0.0
        %552 = vmatpush.msra.mxu0 0.0
        %553 = vmatpush.msra.mxu0 0.0
        %554 = vmatpush.msra.mxu0 0.0
        %555 = vmatpush.msra.mxu0 0.0
        %556 = vmatpush.msra.mxu0 0.0
        %557 = vmatpush.msra.mxu0 0.0
        %558 = vmatpush.msra.mxu0 0.0
        %559 = vmatpush.msra.mxu0 0.0
        %560 = vmatpush.msra.mxu0 0.0
        %561 = vmatpush.msra.mxu0 0.0
        %562 = vmatpush.msra.mxu0 %v485
        %563 = vmatpush.msra.mxu0 %v306
        %564 = vmatmul.f32.gmra.mxu0 %v467
        %v565 = vpop.f32.mrf.mxu0
        %v566 = vadd.f32 %v425, %v565
        %567 = vmatmul.f32.gmra.mxu0 %v470
        %v568 = vpop.f32.mrf.mxu0
        %v569 = vadd.f32 %v428, %v568
        %570 = vmatmul.f32.gmra.mxu0 %v473
        %v571 = vpop.f32.mrf.mxu0
        %v572 = vadd.f32 %v431, %v571
        %573 = vmatmul.f32.gmra.mxu0 %v476
        %v574 = vpop.f32.mrf.mxu0
        %v575 = vadd.f32 %v434, %v574
        %576 = vdwg.mxu0
        %577 = vmatpush.msra.mxu0 0.0
        %578 = vmatpush.msra.mxu0 0.0
        %579 = vmatpush.msra.mxu0 0.0
        %580 = vmatpush.msra.mxu0 0.0
        %581 = vmatpush.msra.mxu0 0.0
        %582 = vmatpush.msra.mxu0 0.0
        %583 = vmatpush.msra.mxu0 0.0
        %584 = vmatpush.msra.mxu0 0.0
        %585 = vmatpush.msra.mxu0 0.0
        %586 = vmatpush.msra.mxu0 0.0
        %587 = vmatpush.msra.mxu0 0.0
        %588 = vmatpush.msra.mxu0 0.0
        %589 = vmatpush.msra.mxu0 0.0
        %590 = vmatpush.msra.mxu0 0.0
        %591 = vmatpush.msra.mxu0 %v488
        %592 = vmatpush.msra.mxu0 %v307
        %593 = vmatmul.f32.gmra.mxu0 %v467
        %v594 = vpop.f32.mrf.mxu0
        %v595 = vadd.f32 %v454, %v594
        %596 = vmatmul.f32.gmra.mxu0 %v470
        %v597 = vpop.f32.mrf.mxu0
        %v598 = vadd.f32 %v457, %v597
        %599 = vmatmul.f32.gmra.mxu0 %v473
        %v600 = vpop.f32.mrf.mxu0
        %v601 = vadd.f32 %v460, %v600
        %602 = vmatmul.f32.gmra.mxu0 %v476
        %v603 = vpop.f32.mrf.mxu0
        %v604 = vadd.f32 %v463, %v603
        %605 = vdwg.mxu0
        %607 = vset.pattern.permute.xlu0 0
        %608 = vperm.xlu0 %607, %v296
        %v609 = vpop.permute.xlu0 %608
        %612 = vset.pattern.permute.xlu0 0
        %613 = vperm.xlu0 %612, %v297
        %v614 = vpop.permute.xlu0 %613
        %617 = vset.pattern.permute.xlu0 0
        %618 = vperm.xlu0 %617, %v298
        %v619 = vpop.permute.xlu0 %618
        %622 = vset.pattern.permute.xlu0 0
        %623 = vperm.xlu0 %622, %v299
        %v624 = vpop.permute.xlu0 %623
        %v626 = vadd.f32 %v508, %v609
        %v627 = vadd.f32 %v537, %v609
        %v628 = vadd.f32 %v566, %v609
        %v629 = vadd.f32 %v595, %v609
        %v630 = vadd.f32 %v511, %v614
        %v631 = vadd.f32 %v540, %v614
        %v632 = vadd.f32 %v569, %v614
        %v633 = vadd.f32 %v598, %v614
        %v634 = vadd.f32 %v514, %v619
        %v635 = vadd.f32 %v543, %v619
        %v636 = vadd.f32 %v572, %v619
        %v637 = vadd.f32 %v601, %v619
        %v638 = vadd.f32 %v517, %v624
        %v639 = vadd.f32 %v546, %v624
        %v640 = vadd.f32 %v575, %v624
        %v641 = vadd.f32 %v604, %v624
        %v642 = vmul.f32 %v626, 0.01
        %v643 = vmul.f32 %v627, 0.01
        %v644 = vmul.f32 %v628, 0.01
        %v645 = vmul.f32 %v629, 0.01
        %v646 = vmul.f32 %v630, 0.01
        %v647 = vmul.f32 %v631, 0.01
        %v648 = vmul.f32 %v632, 0.01
        %v649 = vmul.f32 %v633, 0.01
        %v650 = vmul.f32 %v634, 0.01
        %v651 = vmul.f32 %v635, 0.01
        %v652 = vmul.f32 %v636, 0.01
        %v653 = vmul.f32 %v637, 0.01
        %v654 = vmul.f32 %v638, 0.01
        %v655 = vmul.f32 %v639, 0.01
        %v656 = vmul.f32 %v640, 0.01
        %v657 = vmul.f32 %v641, 0.01
        %v658 = vmax.f32 %v626, %v642
        %v659 = vmax.f32 %v627, %v643
        %v660 = vmax.f32 %v628, %v644
        %v661 = vmax.f32 %v629, %v645
        %v662 = vmax.f32 %v630, %v646
        %v663 = vmax.f32 %v631, %v647
        %v664 = vmax.f32 %v632, %v648
        %v665 = vmax.f32 %v633, %v649
        %v666 = vmax.f32 %v634, %v650
        %v667 = vmax.f32 %v635, %v651
        %v668 = vmax.f32 %v636, %v652
        %v669 = vmax.f32 %v637, %v653
        %v670 = vmax.f32 %v638, %v654
        %v671 = vmax.f32 %v639, %v655
        %v672 = vmax.f32 %v640, %v656
        %v673 = vmax.f32 %v641, %v657
        %v674 = vadd.f32 %v658, %v662
        %v675 = vadd.f32 %v674, %v666
        %v676 = vadd.f32 %v675, %v670
        %v677 = vrot.slane %v676, 4
        %v678 = vadd.f32 %v676, %v677
        %v679 = vrot.slane %v678, 2
        %v680 = vadd.f32 %v678, %v679
        %v681 = vrot.slane %v680, 1
        %v682 = vadd.f32 %v680, %v681
        %v683 = vadd.f32 %v659, %v663
        %v684 = vadd.f32 %v683, %v667
        %v685 = vadd.f32 %v684, %v671
        %v686 = vrot.slane %v685, 4
        %v687 = vadd.f32 %v685, %v686
        %v688 = vrot.slane %v687, 2
        %v689 = vadd.f32 %v687, %v688
        %v690 = vrot.slane %v689, 1
        %v691 = vadd.f32 %v689, %v690
        %v692 = vadd.f32 %v660, %v664
        %v693 = vadd.f32 %v692, %v668
        %v694 = vadd.f32 %v693, %v672
        %v695 = vrot.slane %v694, 4
        %v696 = vadd.f32 %v694, %v695
        %v697 = vrot.slane %v696, 2
        %v698 = vadd.f32 %v696, %v697
        %v699 = vrot.slane %v698, 1
        %v700 = vadd.f32 %v698, %v699
        %v701 = vadd.f32 %v661, %v665
        %v702 = vadd.f32 %v701, %v669
        %v703 = vadd.f32 %v702, %v673
        %v704 = vrot.slane %v703, 4
        %v705 = vadd.f32 %v703, %v704
        %v706 = vrot.slane %v705, 2
        %v707 = vadd.f32 %v705, %v706
        %v708 = vrot.slane %v707, 1
        %v709 = vadd.f32 %v707, %v708
        %v710 = vmul.f32 %v682, 0.03125
        %v711 = vmul.f32 %v691, 0.03125
        %v712 = vmul.f32 %v700, 0.03125
        %v713 = vmul.f32 %v709, 0.03125
        %v714 = vmul.f32 %v658, %v658
        %v715 = vmul.f32 %v659, %v659
        %v716 = vmul.f32 %v660, %v660
        %v717 = vmul.f32 %v661, %v661
        %v718 = vmul.f32 %v662, %v662
        %v719 = vmul.f32 %v663, %v663
        %v720 = vmul.f32 %v664, %v664
        %v721 = vmul.f32 %v665, %v665
        %v722 = vmul.f32 %v666, %v666
        %v723 = vmul.f32 %v667, %v667
        %v724 = vmul.f32 %v668, %v668
        %v725 = vmul.f32 %v669, %v669
        %v726 = vmul.f32 %v670, %v670
        %v727 = vmul.f32 %v671, %v671
        %v728 = vmul.f32 %v672, %v672
        %v729 = vmul.f32 %v673, %v673
        %v730 = vadd.f32 %v714, %v718
        %v731 = vadd.f32 %v730, %v722
        %v732 = vadd.f32 %v731, %v726
        %v733 = vrot.slane %v732, 4
        %v734 = vadd.f32 %v732, %v733
        %v735 = vrot.slane %v734, 2
        %v736 = vadd.f32 %v734, %v735
        %v737 = vrot.slane %v736, 1
        %v738 = vadd.f32 %v736, %v737
        %v739 = vadd.f32 %v715, %v719
        %v740 = vadd.f32 %v739, %v723
        %v741 = vadd.f32 %v740, %v727
        %v742 = vrot.slane %v741, 4
        %v743 = vadd.f32 %v741, %v742
        %v744 = vrot.slane %v743, 2
        %v745 = vadd.f32 %v743, %v744
        %v746 = vrot.slane %v745, 1
        %v747 = vadd.f32 %v745, %v746
        %v748 = vadd.f32 %v716, %v720
        %v749 = vadd.f32 %v748, %v724
        %v750 = vadd.f32 %v749, %v728
        %v751 = vrot.slane %v750, 4
        %v752 = vadd.f32 %v750, %v751
        %v753 = vrot.slane %v752, 2
        %v754 = vadd.f32 %v752, %v753
        %v755 = vrot.slane %v754, 1
        %v756 = vadd.f32 %v754, %v755
        %v757 = vadd.f32 %v717, %v721
        %v758 = vadd.f32 %v757, %v725
        %v759 = vadd.f32 %v758, %v729
        %v760 = vrot.slane %v759, 4
        %v761 = vadd.f32 %v759, %v760
        %v762 = vrot.slane %v761, 2
        %v763 = vadd.f32 %v761, %v762
        %v764 = vrot.slane %v763, 1
        %v765 = vadd.f32 %v763, %v764
        %v766 = vmul.f32 %v738, 0.03125
        %v767 = vmul.f32 %v747, 0.03125
        %v768 = vmul.f32 %v756, 0.03125
        %v769 = vmul.f32 %v765, 0.03125
        %v770 = vsub.f32 %v658, %v710
        %v771 = vsub.f32 %v659, %v711
        %v772 = vsub.f32 %v660, %v712
        %v773 = vsub.f32 %v661, %v713
        %v774 = vsub.f32 %v662, %v710
        %v775 = vsub.f32 %v663, %v711
        %v776 = vsub.f32 %v664, %v712
        %v777 = vsub.f32 %v665, %v713
        %v778 = vsub.f32 %v666, %v710
        %v779 = vsub.f32 %v667, %v711
        %v780 = vsub.f32 %v668, %v712
        %v781 = vsub.f32 %v669, %v713
        %v782 = vsub.f32 %v670, %v710
        %v783 = vsub.f32 %v671, %v711
        %v784 = vsub.f32 %v672, %v712
        %v785 = vsub.f32 %v673, %v713
        %v786 = vmul.f32 %v710, %v710
        %v787 = vmul.f32 %v711, %v711
        %v788 = vmul.f32 %v712, %v712
        %v789 = vmul.f32 %v713, %v713
        %v790 = vsub.f32 %v766, %v786
        %v791 = vsub.f32 %v767, %v787
        %v792 = vsub.f32 %v768, %v788
        %v793 = vsub.f32 %v769, %v789
        %v794 = vadd.f32 %v790, 1e-05
        %v795 = vadd.f32 %v791, 1e-05
        %v796 = vadd.f32 %v792, 1e-05
        %v797 = vadd.f32 %v793, 1e-05
        %v798 = vrsqrt.pop %v794
        %v799 = vmul.f32 %v798, %v794
        %v800 = vmul.f32 %v799, %v798
        %v801 = vmul.f32 0.5, %v800
        %v802 = vsub.f32 1.5, %v801
        %v803 = vmul.f32 %v798, %v802
        %vm804 = vweird.f32 %v794
        %vm805 = vweird.f32 %v798
        %vm806 = vmor %vm804, %vm805
        %v807 = vsel %vm806, %v798, %v803
        %v808 = vrsqrt.pop %v795
        %v809 = vmul.f32 %v808, %v795
        %v810 = vmul.f32 %v809, %v808
        %v811 = vmul.f32 0.5, %v810
        %v812 = vsub.f32 1.5, %v811
        %v813 = vmul.f32 %v808, %v812
        %vm814 = vweird.f32 %v795
        %vm815 = vweird.f32 %v808
        %vm816 = vmor %vm814, %vm815
        %v817 = vsel %vm816, %v808, %v813
        %v818 = vrsqrt.pop %v796
        %v819 = vmul.f32 %v818, %v796
        %v820 = vmul.f32 %v819, %v818
        %v821 = vmul.f32 0.5, %v820
        %v822 = vsub.f32 1.5, %v821
        %v823 = vmul.f32 %v818, %v822
        %vm824 = vweird.f32 %v796
        %vm825 = vweird.f32 %v818
        %vm826 = vmor %vm824, %vm825
        %v827 = vsel %vm826, %v818, %v823
        %v828 = vrsqrt.pop %v797
        %v829 = vmul.f32 %v828, %v797
        %v830 = vmul.f32 %v829, %v828
        %v831 = vmul.f32 0.5, %v830
        %v832 = vsub.f32 1.5, %v831
        %v833 = vmul.f32 %v828, %v832
        %vm834 = vweird.f32 %v797
        %vm835 = vweird.f32 %v828
        %vm836 = vmor %vm834, %vm835
        %v837 = vsel %vm836, %v828, %v833
        %v838 = vmul.f32 %v770, %v807
        %v839 = vmul.f32 %v771, %v817
        %v840 = vmul.f32 %v772, %v827
        %v841 = vmul.f32 %v773, %v837
        %v842 = vmul.f32 %v774, %v807
        %v843 = vmul.f32 %v775, %v817
        %v844 = vmul.f32 %v776, %v827
        %v845 = vmul.f32 %v777, %v837
        %v846 = vmul.f32 %v778, %v807
        %v847 = vmul.f32 %v779, %v817
        %v848 = vmul.f32 %v780, %v827
        %v849 = vmul.f32 %v781, %v837
        %v850 = vmul.f32 %v782, %v807
        %v851 = vmul.f32 %v783, %v817
        %v852 = vmul.f32 %v784, %v827
        %v853 = vmul.f32 %v785, %v837
        %v854 = vld [vmem:[%s4] sm:$0xff]
        %v855 = vld [vmem:[%s4 + $0x8] sm:$0xff]
        %v856 = vld [vmem:[%s4 + $0x10] sm:$0xff]
        %v857 = vld [vmem:[%s4 + $0x18] sm:$0xff]
        %858 = vset.pattern.permute.xlu0 1
        %859 = vperm.xlu0 %858, %v296
        %v860 = vpop.permute.xlu0 %859
        %862 = vset.pattern.permute.xlu0 1
        %863 = vperm.xlu0 %862, %v297
        %v864 = vpop.permute.xlu0 %863
        %866 = vset.pattern.permute.xlu0 1
        %867 = vperm.xlu0 %866, %v298
        %v868 = vpop.permute.xlu0 %867
        %870 = vset.pattern.permute.xlu0 1
        %871 = vperm.xlu0 %870, %v299
        %v872 = vpop.permute.xlu0 %871
        %vm874 = vcmask 261120
        %v876 = vsel %vm874, %v854, 0
        %v879 = vsel %vm874, %v855, 0
        %v882 = vsel %vm874, %v856, 0
        %v885 = vsel %vm874, %v857, 0
        %887 = vmatpush.msra.mxu0 0.0
        %888 = vmatpush.msra.mxu0 0.0
        %889 = vmatpush.msra.mxu0 0.0
        %890 = vmatpush.msra.mxu0 0.0
        %891 = vmatpush.msra.mxu0 0.0
        %892 = vmatpush.msra.mxu0 0.0
        %893 = vmatpush.msra.mxu0 0.0
        %894 = vmatpush.msra.mxu0 0.0
        %895 = vmatpush.msra.mxu0 0.0
        %896 = vmatpush.msra.mxu0 0.0
        %897 = vmatpush.msra.mxu0 0.0
        %898 = vmatpush.msra.mxu0 0.0
        %899 = vmatpush.msra.mxu0 %v850
        %900 = vmatpush.msra.mxu0 %v846
        %901 = vmatpush.msra.mxu0 %v842
        %902 = vmatpush.msra.mxu0 %v838
        %903 = vmatmul.f32.gmra.mxu0 %v876
        %v904 = vpop.f32.mrf.mxu0
        %v905 = vadd.f32 %v860, %v904
        %906 = vmatmul.f32.gmra.mxu0 %v879
        %v907 = vpop.f32.mrf.mxu0
        %v908 = vadd.f32 %v864, %v907
        %909 = vmatmul.f32.gmra.mxu0 %v882
        %v910 = vpop.f32.mrf.mxu0
        %v911 = vadd.f32 %v868, %v910
        %912 = vmatmul.f32.gmra.mxu0 %v885
        %v913 = vpop.f32.mrf.mxu0
        %v914 = vadd.f32 %v872, %v913
        %915 = vdwg.mxu0
        %916 = vmatpush.msra.mxu0 0.0
        %917 = vmatpush.msra.mxu0 0.0
        %918 = vmatpush.msra.mxu0 0.0
        %919 = vmatpush.msra.mxu0 0.0
        %920 = vmatpush.msra.mxu0 0.0
        %921 = vmatpush.msra.mxu0 0.0
        %922 = vmatpush.msra.mxu0 0.0
        %923 = vmatpush.msra.mxu0 0.0
        %924 = vmatpush.msra.mxu0 0.0
        %925 = vmatpush.msra.mxu0 0.0
        %926 = vmatpush.msra.mxu0 0.0
        %927 = vmatpush.msra.mxu0 0.0
        %928 = vmatpush.msra.mxu0 %v851
        %929 = vmatpush.msra.mxu0 %v847
        %930 = vmatpush.msra.mxu0 %v843
        %931 = vmatpush.msra.mxu0 %v839
        %932 = vmatmul.f32.gmra.mxu0 %v876
        %v933 = vpop.f32.mrf.mxu0
        %v934 = vadd.f32 %v860, %v933
        %935 = vmatmul.f32.gmra.mxu0 %v879
        %v936 = vpop.f32.mrf.mxu0
        %v937 = vadd.f32 %v864, %v936
        %938 = vmatmul.f32.gmra.mxu0 %v882
        %v939 = vpop.f32.mrf.mxu0
        %v940 = vadd.f32 %v868, %v939
        %941 = vmatmul.f32.gmra.mxu0 %v885
        %v942 = vpop.f32.mrf.mxu0
        %v943 = vadd.f32 %v872, %v942
        %944 = vdwg.mxu0
        %945 = vmatpush.msra.mxu0 0.0
        %946 = vmatpush.msra.mxu0 0.0
        %947 = vmatpush.msra.mxu0 0.0
        %948 = vmatpush.msra.mxu0 0.0
        %949 = vmatpush.msra.mxu0 0.0
        %950 = vmatpush.msra.mxu0 0.0
        %951 = vmatpush.msra.mxu0 0.0
        %952 = vmatpush.msra.mxu0 0.0
        %953 = vmatpush.msra.mxu0 0.0
        %954 = vmatpush.msra.mxu0 0.0
        %955 = vmatpush.msra.mxu0 0.0
        %956 = vmatpush.msra.mxu0 0.0
        %957 = vmatpush.msra.mxu0 %v852
        %958 = vmatpush.msra.mxu0 %v848
        %959 = vmatpush.msra.mxu0 %v844
        %960 = vmatpush.msra.mxu0 %v840
        %961 = vmatmul.f32.gmra.mxu0 %v876
        %v962 = vpop.f32.mrf.mxu0
        %v963 = vadd.f32 %v860, %v962
        %964 = vmatmul.f32.gmra.mxu0 %v879
        %v965 = vpop.f32.mrf.mxu0
        %v966 = vadd.f32 %v864, %v965
        %967 = vmatmul.f32.gmra.mxu0 %v882
        %v968 = vpop.f32.mrf.mxu0
        %v969 = vadd.f32 %v868, %v968
        %970 = vmatmul.f32.gmra.mxu0 %v885
        %v971 = vpop.f32.mrf.mxu0
        %v972 = vadd.f32 %v872, %v971
        %973 = vdwg.mxu0
        %974 = vmatpush.msra.mxu0 0.0
        %975 = vmatpush.msra.mxu0 0.0
        %976 = vmatpush.msra.mxu0 0.0
        %977 = vmatpush.msra.mxu0 0.0
        %978 = vmatpush.msra.mxu0 0.0
        %979 = vmatpush.msra.mxu0 0.0
        %980 = vmatpush.msra.mxu0 0.0
        %981 = vmatpush.msra.mxu0 0.0
        %982 = vmatpush.msra.mxu0 0.0
        %983 = vmatpush.msra.mxu0 0.0
        %984 = vmatpush.msra.mxu0 0.0
        %985 = vmatpush.msra.mxu0 0.0
        %986 = vmatpush.msra.mxu0 %v853
        %987 = vmatpush.msra.mxu0 %v849
        %988 = vmatpush.msra.mxu0 %v845
        %989 = vmatpush.msra.mxu0 %v841
        %990 = vmatmul.f32.gmra.mxu0 %v876
        %v991 = vpop.f32.mrf.mxu0
        %v992 = vadd.f32 %v860, %v991
        %993 = vmatmul.f32.gmra.mxu0 %v879
        %v994 = vpop.f32.mrf.mxu0
        %v995 = vadd.f32 %v864, %v994
        %996 = vmatmul.f32.gmra.mxu0 %v882
        %v997 = vpop.f32.mrf.mxu0
        %v998 = vadd.f32 %v868, %v997
        %999 = vmatmul.f32.gmra.mxu0 %v885
        %v1000 = vpop.f32.mrf.mxu0
        %v1001 = vadd.f32 %v872, %v1000
        %1002 = vdwg.mxu0
        %v1003 = vmul.f32 %v905, 0.01
        %v1004 = vmul.f32 %v934, 0.01
        %v1005 = vmul.f32 %v963, 0.01
        %v1006 = vmul.f32 %v992, 0.01
        %v1007 = vmul.f32 %v908, 0.01
        %v1008 = vmul.f32 %v937, 0.01
        %v1009 = vmul.f32 %v966, 0.01
        %v1010 = vmul.f32 %v995, 0.01
        %v1011 = vmul.f32 %v911, 0.01
        %v1012 = vmul.f32 %v940, 0.01
        %v1013 = vmul.f32 %v969, 0.01
        %v1014 = vmul.f32 %v998, 0.01
        %v1015 = vmul.f32 %v914, 0.01
        %v1016 = vmul.f32 %v943, 0.01
        %v1017 = vmul.f32 %v972, 0.01
        %v1018 = vmul.f32 %v1001, 0.01
        %v1019 = vmax.f32 %v905, %v1003
        %v1020 = vmax.f32 %v934, %v1004
        %v1021 = vmax.f32 %v963, %v1005
        %v1022 = vmax.f32 %v992, %v1006
        %v1023 = vmax.f32 %v908, %v1007
        %v1024 = vmax.f32 %v937, %v1008
        %v1025 = vmax.f32 %v966, %v1009
        %v1026 = vmax.f32 %v995, %v1010
        %v1027 = vmax.f32 %v911, %v1011
        %v1028 = vmax.f32 %v940, %v1012
        %v1029 = vmax.f32 %v969, %v1013
        %v1030 = vmax.f32 %v998, %v1014
        %v1031 = vmax.f32 %v914, %v1015
        %v1032 = vmax.f32 %v943, %v1016
        %v1033 = vmax.f32 %v972, %v1017
        %v1034 = vmax.f32 %v1001, %v1018
        %v1035 = vadd.f32 %v1019, %v1023
        %v1036 = vadd.f32 %v1035, %v1027
        %v1037 = vadd.f32 %v1036, %v1031
        %v1038 = vrot.slane %v1037, 4
        %v1039 = vadd.f32 %v1037, %v1038
        %v1040 = vrot.slane %v1039, 2
        %v1041 = vadd.f32 %v1039, %v1040
        %v1042 = vrot.slane %v1041, 1
        %v1043 = vadd.f32 %v1041, %v1042
        %v1044 = vadd.f32 %v1020, %v1024
        %v1045 = vadd.f32 %v1044, %v1028
        %v1046 = vadd.f32 %v1045, %v1032
        %v1047 = vrot.slane %v1046, 4
        %v1048 = vadd.f32 %v1046, %v1047
        %v1049 = vrot.slane %v1048, 2
        %v1050 = vadd.f32 %v1048, %v1049
        %v1051 = vrot.slane %v1050, 1
        %v1052 = vadd.f32 %v1050, %v1051
        %v1053 = vadd.f32 %v1021, %v1025
        %v1054 = vadd.f32 %v1053, %v1029
        %v1055 = vadd.f32 %v1054, %v1033
        %v1056 = vrot.slane %v1055, 4
        %v1057 = vadd.f32 %v1055, %v1056
        %v1058 = vrot.slane %v1057, 2
        %v1059 = vadd.f32 %v1057, %v1058
        %v1060 = vrot.slane %v1059, 1
        %v1061 = vadd.f32 %v1059, %v1060
        %v1062 = vadd.f32 %v1022, %v1026
        %v1063 = vadd.f32 %v1062, %v1030
        %v1064 = vadd.f32 %v1063, %v1034
        %v1065 = vrot.slane %v1064, 4
        %v1066 = vadd.f32 %v1064, %v1065
        %v1067 = vrot.slane %v1066, 2
        %v1068 = vadd.f32 %v1066, %v1067
        %v1069 = vrot.slane %v1068, 1
        %v1070 = vadd.f32 %v1068, %v1069
        %v1071 = vmul.f32 %v1043, 0.03125
        %v1072 = vmul.f32 %v1052, 0.03125
        %v1073 = vmul.f32 %v1061, 0.03125
        %v1074 = vmul.f32 %v1070, 0.03125
        %v1075 = vmul.f32 %v1019, %v1019
        %v1076 = vmul.f32 %v1020, %v1020
        %v1077 = vmul.f32 %v1021, %v1021
        %v1078 = vmul.f32 %v1022, %v1022
        %v1079 = vmul.f32 %v1023, %v1023
        %v1080 = vmul.f32 %v1024, %v1024
        %v1081 = vmul.f32 %v1025, %v1025
        %v1082 = vmul.f32 %v1026, %v1026
        %v1083 = vmul.f32 %v1027, %v1027
        %v1084 = vmul.f32 %v1028, %v1028
        %v1085 = vmul.f32 %v1029, %v1029
        %v1086 = vmul.f32 %v1030, %v1030
        %v1087 = vmul.f32 %v1031, %v1031
        %v1088 = vmul.f32 %v1032, %v1032
        %v1089 = vmul.f32 %v1033, %v1033
        %v1090 = vmul.f32 %v1034, %v1034
        %v1091 = vadd.f32 %v1075, %v1079
        %v1092 = vadd.f32 %v1091, %v1083
        %v1093 = vadd.f32 %v1092, %v1087
        %v1094 = vrot.slane %v1093, 4
        %v1095 = vadd.f32 %v1093, %v1094
        %v1096 = vrot.slane %v1095, 2
        %v1097 = vadd.f32 %v1095, %v1096
        %v1098 = vrot.slane %v1097, 1
        %v1099 = vadd.f32 %v1097, %v1098
        %v1100 = vadd.f32 %v1076, %v1080
        %v1101 = vadd.f32 %v1100, %v1084
        %v1102 = vadd.f32 %v1101, %v1088
        %v1103 = vrot.slane %v1102, 4
        %v1104 = vadd.f32 %v1102, %v1103
        %v1105 = vrot.slane %v1104, 2
        %v1106 = vadd.f32 %v1104, %v1105
        %v1107 = vrot.slane %v1106, 1
        %v1108 = vadd.f32 %v1106, %v1107
        %v1109 = vadd.f32 %v1077, %v1081
        %v1110 = vadd.f32 %v1109, %v1085
        %v1111 = vadd.f32 %v1110, %v1089
        %v1112 = vrot.slane %v1111, 4
        %v1113 = vadd.f32 %v1111, %v1112
        %v1114 = vrot.slane %v1113, 2
        %v1115 = vadd.f32 %v1113, %v1114
        %v1116 = vrot.slane %v1115, 1
        %v1117 = vadd.f32 %v1115, %v1116
        %v1118 = vadd.f32 %v1078, %v1082
        %v1119 = vadd.f32 %v1118, %v1086
        %v1120 = vadd.f32 %v1119, %v1090
        %v1121 = vrot.slane %v1120, 4
        %v1122 = vadd.f32 %v1120, %v1121
        %v1123 = vrot.slane %v1122, 2
        %v1124 = vadd.f32 %v1122, %v1123
        %v1125 = vrot.slane %v1124, 1
        %v1126 = vadd.f32 %v1124, %v1125
        %v1127 = vmul.f32 %v1099, 0.03125
        %v1128 = vmul.f32 %v1108, 0.03125
        %v1129 = vmul.f32 %v1117, 0.03125
        %v1130 = vmul.f32 %v1126, 0.03125
        %v1131 = vmul.f32 %v1071, %v1071
        %v1132 = vmul.f32 %v1072, %v1072
        %v1133 = vmul.f32 %v1073, %v1073
        %v1134 = vmul.f32 %v1074, %v1074
        %v1135 = vsub.f32 %v1127, %v1131
        %v1136 = vsub.f32 %v1128, %v1132
        %v1137 = vsub.f32 %v1129, %v1133
        %v1138 = vsub.f32 %v1130, %v1134
        %v1139 = vadd.f32 %v1135, 1e-05
        %v1140 = vadd.f32 %v1136, 1e-05
        %v1141 = vadd.f32 %v1137, 1e-05
        %v1142 = vadd.f32 %v1138, 1e-05
        %v1143 = vrsqrt.pop %v1139
        %v1144 = vmul.f32 %v1143, %v1139
        %v1145 = vmul.f32 %v1144, %v1143
        %v1146 = vmul.f32 0.5, %v1145
        %v1147 = vsub.f32 1.5, %v1146
        %v1148 = vmul.f32 %v1143, %v1147
        %vm1149 = vweird.f32 %v1139
        %vm1150 = vweird.f32 %v1143
        %vm1151 = vmor %vm1149, %vm1150
        %v1152 = vsel %vm1151, %v1143, %v1148
        %v1153 = vrsqrt.pop %v1140
        %v1154 = vmul.f32 %v1153, %v1140
        %v1155 = vmul.f32 %v1154, %v1153
        %v1156 = vmul.f32 0.5, %v1155
        %v1157 = vsub.f32 1.5, %v1156
        %v1158 = vmul.f32 %v1153, %v1157
        %vm1159 = vweird.f32 %v1140
        %vm1160 = vweird.f32 %v1153
        %vm1161 = vmor %vm1159, %vm1160
        %v1162 = vsel %vm1161, %v1153, %v1158
        %v1163 = vrsqrt.pop %v1141
        %v1164 = vmul.f32 %v1163, %v1141
        %v1165 = vmul.f32 %v1164, %v1163
        %v1166 = vmul.f32 0.5, %v1165
        %v1167 = vsub.f32 1.5, %v1166
        %v1168 = vmul.f32 %v1163, %v1167
        %vm1169 = vweird.f32 %v1141
        %vm1170 = vweird.f32 %v1163
        %vm1171 = vmor %vm1169, %vm1170
        %v1172 = vsel %vm1171, %v1163, %v1168
        %v1173 = vrsqrt.pop %v1142
        %v1174 = vmul.f32 %v1173, %v1142
        %v1175 = vmul.f32 %v1174, %v1173
        %v1176 = vmul.f32 0.5, %v1175
        %v1177 = vsub.f32 1.5, %v1176
        %v1178 = vmul.f32 %v1173, %v1177
        %vm1179 = vweird.f32 %v1142
        %vm1180 = vweird.f32 %v1173
        %vm1181 = vmor %vm1179, %vm1180
        %v1182 = vsel %vm1181, %v1173, %v1178
        %1183 = vset.pattern.permute.xlu0 2
        %1184 = vperm.xlu0 %1183, %v296
        %v1185 = vpop.permute.xlu0 %1184
        %1187 = vset.pattern.permute.xlu0 2
        %1188 = vperm.xlu0 %1187, %v297
        %v1189 = vpop.permute.xlu0 %1188
        %1191 = vset.pattern.permute.xlu0 2
        %1192 = vperm.xlu0 %1191, %v298
        %v1193 = vpop.permute.xlu0 %1192
        %1195 = vset.pattern.permute.xlu0 2
        %1196 = vperm.xlu0 %1195, %v299
        %v1197 = vpop.permute.xlu0 %1196
        %v1199 = vmul.f32 %v1019, %v1185
        %v1200 = vmul.f32 %v1020, %v1185
        %v1201 = vmul.f32 %v1021, %v1185
        %v1202 = vmul.f32 %v1022, %v1185
        %v1203 = vmul.f32 %v1023, %v1189
        %v1204 = vmul.f32 %v1024, %v1189
        %v1205 = vmul.f32 %v1025, %v1189
        %v1206 = vmul.f32 %v1026, %v1189
        %v1207 = vmul.f32 %v1027, %v1193
        %v1208 = vmul.f32 %v1028, %v1193
        %v1209 = vmul.f32 %v1029, %v1193
        %v1210 = vmul.f32 %v1030, %v1193
        %v1211 = vmul.f32 %v1031, %v1197
        %v1212 = vmul.f32 %v1032, %v1197
        %v1213 = vmul.f32 %v1033, %v1197
        %v1214 = vmul.f32 %v1034, %v1197
        %v1215 = vadd.f32 %v1199, %v1203
        %v1216 = vadd.f32 %v1215, %v1207
        %v1217 = vadd.f32 %v1216, %v1211
        %v1218 = vrot.slane %v1217, 4
        %v1219 = vadd.f32 %v1217, %v1218
        %v1220 = vrot.slane %v1219, 2
        %v1221 = vadd.f32 %v1219, %v1220
        %v1222 = vrot.slane %v1221, 1
        %v1223 = vadd.f32 %v1221, %v1222
        %v1224 = vadd.f32 %v1200, %v1204
        %v1225 = vadd.f32 %v1224, %v1208
        %v1226 = vadd.f32 %v1225, %v1212
        %v1227 = vrot.slane %v1226, 4
        %v1228 = vadd.f32 %v1226, %v1227
        %v1229 = vrot.slane %v1228, 2
        %v1230 = vadd.f32 %v1228, %v1229
        %v1231 = vrot.slane %v1230, 1
        %v1232 = vadd.f32 %v1230, %v1231
        %v1233 = vadd.f32 %v1201, %v1205
        %v1234 = vadd.f32 %v1233, %v1209
        %v1235 = vadd.f32 %v1234, %v1213
        %v1236 = vrot.slane %v1235, 4
        %v1237 = vadd.f32 %v1235, %v1236
        %v1238 = vrot.slane %v1237, 2
        %v1239 = vadd.f32 %v1237, %v1238
        %v1240 = vrot.slane %v1239, 1
        %v1241 = vadd.f32 %v1239, %v1240
        %v1242 = vadd.f32 %v1202, %v1206
        %v1243 = vadd.f32 %v1242, %v1210
        %v1244 = vadd.f32 %v1243, %v1214
        %v1245 = vrot.slane %v1244, 4
        %v1246 = vadd.f32 %v1244, %v1245
        %v1247 = vrot.slane %v1246, 2
        %v1248 = vadd.f32 %v1246, %v1247
        %v1249 = vrot.slane %v1248, 1
        %v1250 = vadd.f32 %v1248, %v1249
        %1251 = vset.pattern.permute.xlu0 3
        %1252 = vperm.xlu0 %1251, %v296
        %v1253 = vpop.permute.xlu0 %1252
        %v1255 = vmul.f32 %v1071, %v1253
        %v1256 = vmul.f32 %v1072, %v1253
        %v1257 = vmul.f32 %v1073, %v1253
        %v1258 = vmul.f32 %v1074, %v1253
        %v1259 = vsub.f32 %v1223, %v1255
        %v1260 = vsub.f32 %v1232, %v1256
        %v1261 = vsub.f32 %v1241, %v1257
        %v1262 = vsub.f32 %v1250, %v1258
        %v1263 = vmul.f32 %v1152, %v1259
        %v1264 = vmul.f32 %v1162, %v1260
        %v1265 = vmul.f32 %v1172, %v1261
        %v1266 = vmul.f32 %v1182, %v1262
        %1267 = vset.pattern.permute.xlu0 4
        %1268 = vperm.xlu0 %1267, %v296
        %v1269 = vpop.permute.xlu0 %1268
        %v1271 = vadd.f32 %v1263, %v1269
        %v1272 = vadd.f32 %v1264, %v1269
        %v1273 = vadd.f32 %v1265, %v1269
        %v1274 = vadd.f32 %v1266, %v1269
        %v1279 = vrot.slane %v1272, 7
        %v1280 = vrot.slane %v1273, 6
        %v1281 = vrot.slane %v1274, 5
        %vm1282 = vcmask 1040384
        %v1283 = vsel %vm1282, %v1271, %v1279
        %vm1284 = vcmask 1042434
        %v1285 = vsel %vm1284, %v1280, %v1281
        %vm1286 = vcmask 1041408
        %v1287 = vsel %vm1286, %v1283, %v1285
        %v1289 = vlaneseq
        %vm1290 = vcmp.ge.s32.totalorder %v1289, 0
        %vm1291 = vcmp.lt.s32.totalorder %v1289, 512
        %vm1292 = vmand %vm1290, %vm1291
        %1293 = vst.msk [vmem:[%s287] sm:$0xf] %vm1292, %v1287
        %s1294 = sand.u32 %s167, 1
        %s1295 = scalar_lea.sflag [#allocation4], %s1294
        %s1296 = sand.u32 %s167, 1
        %s1297 = smul.addr %s1296, 4
        %s1298 = scalar_lea.vmem [#allocation5], %s1297
        // Predicated region
        $region49: #{q_forward.1} parent=43 // pred_check
          %p1299 = pneg %p177
        $region50: #{q_forward.1} parent=43 // pred_check_branch
          %1301 = sbr.rel (%p1299) target = $region52
        $region51: #{q_forward.1} parent=43 // pred_region
          %s1302 = smul.u32 4, %s23
          %1304 = vsyncadd %s1295, 0
          %s1305 = scalar_lea.hbm %s6, %s1302
          %s1307 = sshll.u32 %s1298, 4
          %s1308 = int_to_ptr.vmem [resolvable:$true] %s1307
          %s1309 = sshll.u32 %s1305, 4
          %s1310 = int_to_ptr.hbm [resolvable:$true] %s1309
          %1312 = dma.vmem_to_hbm [thread:$0]  %s1308, 64, %s1310, %s1295
        $region52: #{q_forward.1} parent=43 // pred_fallthru
          _
      $region44: #{q_forward.1} parent=5 // pred_fallthru
        _
      %p1313 = scmp.le.s32.totalorder 2, %s18
      // Predicated region
      $region53: #{q_forward.1} parent=5 // pred_check
        %p1314 = pneg %p1313
      $region54: #{q_forward.1} parent=5 // pred_check_branch
        %1316 = sbr.rel (%p1314) target = $region56
      $region55: #{q_forward.1} parent=5 // pred_region
        %s1317 = ssub.s32 %s18, 2
        // Predicated region
        $region57: #{q_forward.1} parent=55 // pred_check
          %p1318 = pneg %p183
        $region58: #{q_forward.1} parent=55 // pred_check_branch
          %1320 = sbr.rel (%p1318) target = $region60
        $region59: #{q_forward.1} parent=55 // pred_region
          %s1321 = sand.u32 %s168, 1
          %s1322 = scalar_lea.sflag [#allocation4], %s1321
          %s1323 = sand.u32 %s168, 1
          %s1324 = smul.addr %s1323, 4
          %s1325 = scalar_lea.vmem [#allocation5], %s1324
          %1327 = dma.done %s1322, 64
        $region60: #{q_forward.1} parent=55 // pred_fallthru
          _
      $region56: #{q_forward.1} parent=5 // pred_fallthru
        _
    $region6: #{q_forward.1} parent=1 // loop_footer
      %s22 = sadd.s32 1, %s18
    $region7: #{q_forward.1} parent=1 // loop_footer_branch
      %17 = sbr.rel target = $region3
    $region8: #{q_forward.1} parent=1 // loop_exit
      _
    %1328 = vsyncpa [#allocation3], 1
    %s1329 = scalar_lea.sflag [#allocation3], 1
    %1330 = vsyncpa %s1329, 1
    %1331 = vsyncpa [#allocation4], 1
    %s1332 = scalar_lea.sflag [#allocation4], 1
    %1333 = vsyncpa %s1332, 1

</llo_original>
